<compile_context>
chip_gen: v6e
topology: v6e:2x2x1
jax: 0.10.0
libtpu: 0.0.40
codegen_flags: <defaults>
</compile_context>

<pallas_src>
import jax
import jax.numpy as jnp
from jax.experimental import pallas as pl
from jax.experimental.pallas import tpu as pltpu  # noqa: F401  (TPU backend assumed)


def _ensemble_mlp_kernel(xs_ref, xa_ref, w1_ref, b1_ref, w2_ref, b2_ref,
                         w3_ref, b3_ref, out_ref):
    # xs_ref: (B, E*S)      xa_ref: (B, E*A)
    # w1_ref: (E, S+A, H)   b1_ref: (E, 1, H)
    # w2_ref: (E, H, H)     b2_ref: (E, 1, H)
    # w3_ref: (E, H, 2S)    b3_ref: (E, 1, 2S)
    # out_ref: (B, E*2S)    member e's raw (mean | log_std) occupies lanes
    #                       [e*2S, (e+1)*2S)
    E = w1_ref.shape[0]
    S = xs_ref.shape[1] // E
    A = xa_ref.shape[1] // E

    xs = xs_ref[...]          # loaded once; per-member access is a lane slice
    xa = xa_ref[...]

    outs = []
    for e in range(E):        # E is small (ensemble size); unrolled at trace time
        xs_e = xs[:, e * S:(e + 1) * S]
        xa_e = xa[:, e * A:(e + 1) * A]

        # Split-K first layer: avoids an in-kernel unaligned lane concatenate.
        h1 = (jnp.dot(xs_e, w1_ref[e, :S, :], preferred_element_type=jnp.float32)
              + jnp.dot(xa_e, w1_ref[e, S:, :], preferred_element_type=jnp.float32)
              + b1_ref[e])
        h1 = jnp.maximum(h1, 0.0)

        h2 = jnp.dot(h1, w2_ref[e], preferred_element_type=jnp.float32) + b2_ref[e]
        h2 = jnp.maximum(h2, 0.0)

        o_e = jnp.dot(h2, w3_ref[e], preferred_element_type=jnp.float32) + b3_ref[e]
        outs.append(o_e)

    # One lane-dense store for the whole ensemble.
    out_ref[...] = jnp.concatenate(outs, axis=-1).astype(out_ref.dtype)


def ensemble_dynamics_forward(state, action, params,
                              min_log_std=-5.0, max_log_std=1.0):
    """state: (B, E, S), action: (B, E, A) -> (mean, log_std), each (B, E, S)."""
    w1, b1, w2, b2, w3, b3 = params
    B, E, S = state.shape
    A = action.shape[-1]
    H = w1.shape[-1]
    Dout = w3.shape[-1]          # = 2 * S

    # Lane-packed activations: (B, E, S) -> (B, E*S) (trailing-dim collapse only;
    # no transpose / concat round-trips).
    xs = state.reshape(B, E * S)
    xa = action.reshape(B, E * A)

    # Biases as (E, 1, D) so the in-kernel leading-dim index yields a 2-D tile.
    b1r = b1.reshape(E, 1, H)
    b2r = b2.reshape(E, 1, H)
    b3r = b3.reshape(E, 1, Dout)

    # Single invocation, no grid: every operand is a whole-array VMEM block.
    out = pl.pallas_call(
        _ensemble_mlp_kernel,
        out_shape=jax.ShapeDtypeStruct((B, E * Dout), state.dtype),
    )(xs, xa, w1, b1r, w2, b2r, w3, b3r)

    # Free wrapper glue: unpack members, split mean/log_std, apply the real clamp.
    out = out.reshape(B, E, Dout)
    mean = out[..., :S]
    log_std = jnp.clip(out[..., S:], min_log_std, max_log_std)
    return mean, log_std


def init_ensemble_params(key, n_ensemble, state_dim, action_dim, hidden=128):
    """Deterministic stacked parameters, PyTorch-Linear-style uniform init."""
    din, dout = state_dim + action_dim, 2 * state_dim
    shapes = [
        ((n_ensemble, din, hidden), din),        # w1
        ((n_ensemble, hidden), din),             # b1
        ((n_ensemble, hidden, hidden), hidden),  # w2
        ((n_ensemble, hidden), hidden),          # b2
        ((n_ensemble, hidden, dout), hidden),    # w3
        ((n_ensemble, dout), hidden),            # b3
    ]
    params = []
    for shape, fan_in in shapes:
        key, sub = jax.random.split(key)
        bound = 1.0 / jnp.sqrt(jnp.float32(fan_in))
        params.append(jax.random.uniform(sub, shape, jnp.float32, -bound, bound))
    return tuple(params)


def _reference_forward(state, action, params, min_log_std=-5.0, max_log_std=1.0):
    """Pure-JAX reference (matches vmap-over-ensemble functional_call)."""
    w1, b1, w2, b2, w3, b3 = params
    x = jnp.concatenate([state, action], axis=-1)          # (B, E, S+A)
    x = jnp.transpose(x, (1, 0, 2))                        # (E, B, S+A)
    h1 = jax.nn.relu(jnp.einsum('ebi,eih->ebh', x, w1) + b1[:, None, :])
    h2 = jax.nn.relu(jnp.einsum('ebh,ehk->ebk', h1, w2) + b2[:, None, :])
    out = jnp.einsum('ebk,eko->ebo', h2, w3) + b3[:, None, :]
    s_dim = state.shape[-1]
    mean = jnp.transpose(out[..., :s_dim], (1, 0, 2))
    log_std = jnp.clip(jnp.transpose(out[..., s_dim:], (1, 0, 2)),
                       min_log_std, max_log_std)
    return mean, log_std


if __name__ == "__main__":
    B, E, S, A, H = 8, 3, 4, 2, 128

    key = jax.random.PRNGKey(0)
    k_state, k_action, k_params = jax.random.split(key, 3)
    state = jax.random.normal(k_state, (B, E, S), jnp.float32)
    action = jax.random.normal(k_action, (B, E, A), jnp.float32)
    params = init_ensemble_params(k_params, E, S, A, hidden=H)

    mean, log_std = ensemble_dynamics_forward(state, action, params,
                                              min_log_std=-5.0, max_log_std=1.0)
    jax.block_until_ready((mean, log_std))

    ref_mean, ref_log_std = _reference_forward(state, action, params)
    assert mean.shape == (B, E, S) and log_std.shape == (B, E, S)
    assert jnp.allclose(mean, ref_mean, atol=1e-4, rtol=1e-4)
    assert jnp.allclose(log_std, ref_log_std, atol=1e-4, rtol=1e-4)

    print("KERNEL_OK")
</pallas_src>

<mosaic_0001>
module attributes {stable_mosaic.version = 11 : i64} {
  func.func @_ensemble_mlp_kernel(%arg0: memref<8x12xf32, #tpu.memory_space<vmem>>, %arg1: memref<8x6xf32, #tpu.memory_space<vmem>>, %arg2: memref<3x6x128xf32, #tpu.memory_space<vmem>>, %arg3: memref<3x1x128xf32, #tpu.memory_space<vmem>>, %arg4: memref<3x128x128xf32, #tpu.memory_space<vmem>>, %arg5: memref<3x1x128xf32, #tpu.memory_space<vmem>>, %arg6: memref<3x128x8xf32, #tpu.memory_space<vmem>>, %arg7: memref<3x1x8xf32, #tpu.memory_space<vmem>>, %arg8: memref<8x24xf32, #tpu.memory_space<vmem>>) attributes {dimension_semantics = [], scalar_prefetch = 0 : i64, scratch_operands = 0 : i64, tpu.core_type = #tpu.core_type<tc>} {
    %c0 = arith.constant 0 : index
    %c0_0 = arith.constant 0 : index
    %0 = vector.load %arg0[%c0, %c0_0] : memref<8x12xf32, #tpu.memory_space<vmem>>, vector<8x12xf32>
    %c0_1 = arith.constant 0 : index
    %c0_2 = arith.constant 0 : index
    %1 = vector.load %arg1[%c0_1, %c0_2] : memref<8x6xf32, #tpu.memory_space<vmem>>, vector<8x6xf32>
    %2 = vector.extract_strided_slice %0 {offsets = [0, 0], sizes = [8, 4], strides = [1, 1]} : vector<8x12xf32> to vector<8x4xf32>
    %3 = vector.extract_strided_slice %1 {offsets = [0, 0], sizes = [8, 2], strides = [1, 1]} : vector<8x6xf32> to vector<8x2xf32>
    %c0_3 = arith.constant 0 : index
    %c0_4 = arith.constant 0 : index
    %c0_5 = arith.constant 0 : index
    %4 = vector.load %arg2[%c0_3, %c0_4, %c0_5] : memref<3x6x128xf32, #tpu.memory_space<vmem>>, vector<1x4x128xf32>
    %5 = vector.shape_cast %4 : vector<1x4x128xf32> to vector<4x128xf32>
    %cst = arith.constant dense<0.000000e+00> : vector<8x128xf32>
    %6 = tpu.matmul %2, %5, %cst {dimension_numbers = #tpu.dot_dimension_numbers<[1], [0], [0], [1], [0, 0, 1, 1], [], []>} : vector<8x4xf32>, vector<4x128xf32>, vector<8x128xf32> -> vector<8x128xf32>
    %c0_6 = arith.constant 0 : index
    %c4 = arith.constant 4 : index
    %c0_7 = arith.constant 0 : index
    %7 = vector.load %arg2[%c0_6, %c4, %c0_7] : memref<3x6x128xf32, #tpu.memory_space<vmem>>, vector<1x2x128xf32>
    %8 = vector.shape_cast %7 : vector<1x2x128xf32> to vector<2x128xf32>
    %cst_8 = arith.constant dense<0.000000e+00> : vector<8x128xf32>
    %9 = tpu.matmul %3, %8, %cst_8 {dimension_numbers = #tpu.dot_dimension_numbers<[1], [0], [0], [1], [0, 0, 1, 1], [], []>} : vector<8x2xf32>, vector<2x128xf32>, vector<8x128xf32> -> vector<8x128xf32>
    %10 = arith.addf %6, %9 : vector<8x128xf32>
    %c0_9 = arith.constant 0 : index
    %c0_10 = arith.constant 0 : index
    %c0_11 = arith.constant 0 : index
    %11 = vector.load %arg3[%c0_9, %c0_10, %c0_11] : memref<3x1x128xf32, #tpu.memory_space<vmem>>, vector<1x1x128xf32>
    %12 = vector.shape_cast %11 : vector<1x1x128xf32> to vector<1x128xf32>
    %13 = vector.broadcast %12 : vector<1x128xf32> to vector<8x128xf32>
    %14 = arith.addf %10, %13 : vector<8x128xf32>
    %cst_12 = arith.constant 0.000000e+00 : f32
    %15 = vector.broadcast %cst_12 : f32 to vector<8x128xf32>
    %16 = arith.maximumf %14, %15 : vector<8x128xf32>
    %c0_13 = arith.constant 0 : index
    %c0_14 = arith.constant 0 : index
    %c0_15 = arith.constant 0 : index
    %17 = vector.load %arg4[%c0_13, %c0_14, %c0_15] : memref<3x128x128xf32, #tpu.memory_space<vmem>>, vector<1x128x128xf32>
    %18 = vector.shape_cast %17 : vector<1x128x128xf32> to vector<128x128xf32>
    %cst_16 = arith.constant dense<0.000000e+00> : vector<8x128xf32>
    %19 = tpu.matmul %16, %18, %cst_16 {dimension_numbers = #tpu.dot_dimension_numbers<[1], [0], [0], [1], [0, 0, 1, 1], [], []>} : vector<8x128xf32>, vector<128x128xf32>, vector<8x128xf32> -> vector<8x128xf32>
    %c0_17 = arith.constant 0 : index
    %c0_18 = arith.constant 0 : index
    %c0_19 = arith.constant 0 : index
    %20 = vector.load %arg5[%c0_17, %c0_18, %c0_19] : memref<3x1x128xf32, #tpu.memory_space<vmem>>, vector<1x1x128xf32>
    %21 = vector.shape_cast %20 : vector<1x1x128xf32> to vector<1x128xf32>
    %22 = vector.broadcast %21 : vector<1x128xf32> to vector<8x128xf32>
    %23 = arith.addf %19, %22 : vector<8x128xf32>
    %cst_20 = arith.constant 0.000000e+00 : f32
    %24 = vector.broadcast %cst_20 : f32 to vector<8x128xf32>
    %25 = arith.maximumf %23, %24 : vector<8x128xf32>
    %c0_21 = arith.constant 0 : index
    %c0_22 = arith.constant 0 : index
    %c0_23 = arith.constant 0 : index
    %26 = vector.load %arg6[%c0_21, %c0_22, %c0_23] : memref<3x128x8xf32, #tpu.memory_space<vmem>>, vector<1x128x8xf32>
    %27 = vector.shape_cast %26 : vector<1x128x8xf32> to vector<128x8xf32>
    %cst_24 = arith.constant dense<0.000000e+00> : vector<8x8xf32>
    %28 = tpu.matmul %25, %27, %cst_24 {dimension_numbers = #tpu.dot_dimension_numbers<[1], [0], [0], [1], [0, 0, 1, 1], [], []>} : vector<8x128xf32>, vector<128x8xf32>, vector<8x8xf32> -> vector<8x8xf32>
    %c0_25 = arith.constant 0 : index
    %c0_26 = arith.constant 0 : index
    %c0_27 = arith.constant 0 : index
    %29 = vector.load %arg7[%c0_25, %c0_26, %c0_27] : memref<3x1x8xf32, #tpu.memory_space<vmem>>, vector<1x1x8xf32>
    %30 = vector.shape_cast %29 : vector<1x1x8xf32> to vector<1x8xf32>
    %31 = vector.broadcast %30 : vector<1x8xf32> to vector<8x8xf32>
    %32 = arith.addf %28, %31 : vector<8x8xf32>
    %33 = vector.extract_strided_slice %0 {offsets = [0, 4], sizes = [8, 4], strides = [1, 1]} : vector<8x12xf32> to vector<8x4xf32>
    %34 = vector.extract_strided_slice %1 {offsets = [0, 2], sizes = [8, 2], strides = [1, 1]} : vector<8x6xf32> to vector<8x2xf32>
    %c1 = arith.constant 1 : index
    %c0_28 = arith.constant 0 : index
    %c0_29 = arith.constant 0 : index
    %35 = vector.load %arg2[%c1, %c0_28, %c0_29] : memref<3x6x128xf32, #tpu.memory_space<vmem>>, vector<1x4x128xf32>
    %36 = vector.shape_cast %35 : vector<1x4x128xf32> to vector<4x128xf32>
    %cst_30 = arith.constant dense<0.000000e+00> : vector<8x128xf32>
    %37 = tpu.matmul %33, %36, %cst_30 {dimension_numbers = #tpu.dot_dimension_numbers<[1], [0], [0], [1], [0, 0, 1, 1], [], []>} : vector<8x4xf32>, vector<4x128xf32>, vector<8x128xf32> -> vector<8x128xf32>
    %c1_31 = arith.constant 1 : index
    %c4_32 = arith.constant 4 : index
    %c0_33 = arith.constant 0 : index
    %38 = vector.load %arg2[%c1_31, %c4_32, %c0_33] : memref<3x6x128xf32, #tpu.memory_space<vmem>>, vector<1x2x128xf32>
    %39 = vector.shape_cast %38 : vector<1x2x128xf32> to vector<2x128xf32>
    %cst_34 = arith.constant dense<0.000000e+00> : vector<8x128xf32>
    %40 = tpu.matmul %34, %39, %cst_34 {dimension_numbers = #tpu.dot_dimension_numbers<[1], [0], [0], [1], [0, 0, 1, 1], [], []>} : vector<8x2xf32>, vector<2x128xf32>, vector<8x128xf32> -> vector<8x128xf32>
    %41 = arith.addf %37, %40 : vector<8x128xf32>
    %c1_35 = arith.constant 1 : index
    %c0_36 = arith.constant 0 : index
    %c0_37 = arith.constant 0 : index
    %42 = vector.load %arg3[%c1_35, %c0_36, %c0_37] : memref<3x1x128xf32, #tpu.memory_space<vmem>>, vector<1x1x128xf32>
    %43 = vector.shape_cast %42 : vector<1x1x128xf32> to vector<1x128xf32>
    %44 = vector.broadcast %43 : vector<1x128xf32> to vector<8x128xf32>
    %45 = arith.addf %41, %44 : vector<8x128xf32>
    %cst_38 = arith.constant 0.000000e+00 : f32
    %46 = vector.broadcast %cst_38 : f32 to vector<8x128xf32>
    %47 = arith.maximumf %45, %46 : vector<8x128xf32>
    %c1_39 = arith.constant 1 : index
    %c0_40 = arith.constant 0 : index
    %c0_41 = arith.constant 0 : index
    %48 = vector.load %arg4[%c1_39, %c0_40, %c0_41] : memref<3x128x128xf32, #tpu.memory_space<vmem>>, vector<1x128x128xf32>
    %49 = vector.shape_cast %48 : vector<1x128x128xf32> to vector<128x128xf32>
    %cst_42 = arith.constant dense<0.000000e+00> : vector<8x128xf32>
    %50 = tpu.matmul %47, %49, %cst_42 {dimension_numbers = #tpu.dot_dimension_numbers<[1], [0], [0], [1], [0, 0, 1, 1], [], []>} : vector<8x128xf32>, vector<128x128xf32>, vector<8x128xf32> -> vector<8x128xf32>
    %c1_43 = arith.constant 1 : index
    %c0_44 = arith.constant 0 : index
    %c0_45 = arith.constant 0 : index
    %51 = vector.load %arg5[%c1_43, %c0_44, %c0_45] : memref<3x1x128xf32, #tpu.memory_space<vmem>>, vector<1x1x128xf32>
    %52 = vector.shape_cast %51 : vector<1x1x128xf32> to vector<1x128xf32>
    %53 = vector.broadcast %52 : vector<1x128xf32> to vector<8x128xf32>
    %54 = arith.addf %50, %53 : vector<8x128xf32>
    %cst_46 = arith.constant 0.000000e+00 : f32
    %55 = vector.broadcast %cst_46 : f32 to vector<8x128xf32>
    %56 = arith.maximumf %54, %55 : vector<8x128xf32>
    %c1_47 = arith.constant 1 : index
    %c0_48 = arith.constant 0 : index
    %c0_49 = arith.constant 0 : index
    %57 = vector.load %arg6[%c1_47, %c0_48, %c0_49] : memref<3x128x8xf32, #tpu.memory_space<vmem>>, vector<1x128x8xf32>
    %58 = vector.shape_cast %57 : vector<1x128x8xf32> to vector<128x8xf32>
    %cst_50 = arith.constant dense<0.000000e+00> : vector<8x8xf32>
    %59 = tpu.matmul %56, %58, %cst_50 {dimension_numbers = #tpu.dot_dimension_numbers<[1], [0], [0], [1], [0, 0, 1, 1], [], []>} : vector<8x128xf32>, vector<128x8xf32>, vector<8x8xf32> -> vector<8x8xf32>
    %c1_51 = arith.constant 1 : index
    %c0_52 = arith.constant 0 : index
    %c0_53 = arith.constant 0 : index
    %60 = vector.load %arg7[%c1_51, %c0_52, %c0_53] : memref<3x1x8xf32, #tpu.memory_space<vmem>>, vector<1x1x8xf32>
    %61 = vector.shape_cast %60 : vector<1x1x8xf32> to vector<1x8xf32>
    %62 = vector.broadcast %61 : vector<1x8xf32> to vector<8x8xf32>
    %63 = arith.addf %59, %62 : vector<8x8xf32>
    %64 = vector.extract_strided_slice %0 {offsets = [0, 8], sizes = [8, 4], strides = [1, 1]} : vector<8x12xf32> to vector<8x4xf32>
    %65 = vector.extract_strided_slice %1 {offsets = [0, 4], sizes = [8, 2], strides = [1, 1]} : vector<8x6xf32> to vector<8x2xf32>
    %c2 = arith.constant 2 : index
    %c0_54 = arith.constant 0 : index
    %c0_55 = arith.constant 0 : index
    %66 = vector.load %arg2[%c2, %c0_54, %c0_55] : memref<3x6x128xf32, #tpu.memory_space<vmem>>, vector<1x4x128xf32>
    %67 = vector.shape_cast %66 : vector<1x4x128xf32> to vector<4x128xf32>
    %cst_56 = arith.constant dense<0.000000e+00> : vector<8x128xf32>
    %68 = tpu.matmul %64, %67, %cst_56 {dimension_numbers = #tpu.dot_dimension_numbers<[1], [0], [0], [1], [0, 0, 1, 1], [], []>} : vector<8x4xf32>, vector<4x128xf32>, vector<8x128xf32> -> vector<8x128xf32>
    %c2_57 = arith.constant 2 : index
    %c4_58 = arith.constant 4 : index
    %c0_59 = arith.constant 0 : index
    %69 = vector.load %arg2[%c2_57, %c4_58, %c0_59] : memref<3x6x128xf32, #tpu.memory_space<vmem>>, vector<1x2x128xf32>
    %70 = vector.shape_cast %69 : vector<1x2x128xf32> to vector<2x128xf32>
    %cst_60 = arith.constant dense<0.000000e+00> : vector<8x128xf32>
    %71 = tpu.matmul %65, %70, %cst_60 {dimension_numbers = #tpu.dot_dimension_numbers<[1], [0], [0], [1], [0, 0, 1, 1], [], []>} : vector<8x2xf32>, vector<2x128xf32>, vector<8x128xf32> -> vector<8x128xf32>
    %72 = arith.addf %68, %71 : vector<8x128xf32>
    %c2_61 = arith.constant 2 : index
    %c0_62 = arith.constant 0 : index
    %c0_63 = arith.constant 0 : index
    %73 = vector.load %arg3[%c2_61, %c0_62, %c0_63] : memref<3x1x128xf32, #tpu.memory_space<vmem>>, vector<1x1x128xf32>
    %74 = vector.shape_cast %73 : vector<1x1x128xf32> to vector<1x128xf32>
    %75 = vector.broadcast %74 : vector<1x128xf32> to vector<8x128xf32>
    %76 = arith.addf %72, %75 : vector<8x128xf32>
    %cst_64 = arith.constant 0.000000e+00 : f32
    %77 = vector.broadcast %cst_64 : f32 to vector<8x128xf32>
    %78 = arith.maximumf %76, %77 : vector<8x128xf32>
    %c2_65 = arith.constant 2 : index
    %c0_66 = arith.constant 0 : index
    %c0_67 = arith.constant 0 : index
    %79 = vector.load %arg4[%c2_65, %c0_66, %c0_67] : memref<3x128x128xf32, #tpu.memory_space<vmem>>, vector<1x128x128xf32>
    %80 = vector.shape_cast %79 : vector<1x128x128xf32> to vector<128x128xf32>
    %cst_68 = arith.constant dense<0.000000e+00> : vector<8x128xf32>
    %81 = tpu.matmul %78, %80, %cst_68 {dimension_numbers = #tpu.dot_dimension_numbers<[1], [0], [0], [1], [0, 0, 1, 1], [], []>} : vector<8x128xf32>, vector<128x128xf32>, vector<8x128xf32> -> vector<8x128xf32>
    %c2_69 = arith.constant 2 : index
    %c0_70 = arith.constant 0 : index
    %c0_71 = arith.constant 0 : index
    %82 = vector.load %arg5[%c2_69, %c0_70, %c0_71] : memref<3x1x128xf32, #tpu.memory_space<vmem>>, vector<1x1x128xf32>
    %83 = vector.shape_cast %82 : vector<1x1x128xf32> to vector<1x128xf32>
    %84 = vector.broadcast %83 : vector<1x128xf32> to vector<8x128xf32>
    %85 = arith.addf %81, %84 : vector<8x128xf32>
    %cst_72 = arith.constant 0.000000e+00 : f32
    %86 = vector.broadcast %cst_72 : f32 to vector<8x128xf32>
    %87 = arith.maximumf %85, %86 : vector<8x128xf32>
    %c2_73 = arith.constant 2 : index
    %c0_74 = arith.constant 0 : index
    %c0_75 = arith.constant 0 : index
    %88 = vector.load %arg6[%c2_73, %c0_74, %c0_75] : memref<3x128x8xf32, #tpu.memory_space<vmem>>, vector<1x128x8xf32>
    %89 = vector.shape_cast %88 : vector<1x128x8xf32> to vector<128x8xf32>
    %cst_76 = arith.constant dense<0.000000e+00> : vector<8x8xf32>
    %90 = tpu.matmul %87, %89, %cst_76 {dimension_numbers = #tpu.dot_dimension_numbers<[1], [0], [0], [1], [0, 0, 1, 1], [], []>} : vector<8x128xf32>, vector<128x8xf32>, vector<8x8xf32> -> vector<8x8xf32>
    %c2_77 = arith.constant 2 : index
    %c0_78 = arith.constant 0 : index
    %c0_79 = arith.constant 0 : index
    %91 = vector.load %arg7[%c2_77, %c0_78, %c0_79] : memref<3x1x8xf32, #tpu.memory_space<vmem>>, vector<1x1x8xf32>
    %92 = vector.shape_cast %91 : vector<1x1x8xf32> to vector<1x8xf32>
    %93 = vector.broadcast %92 : vector<1x8xf32> to vector<8x8xf32>
    %94 = arith.addf %90, %93 : vector<8x8xf32>
    %95 = tpu.concatenate %32, %63, %94 in 1 : vector<8x8xf32>, vector<8x8xf32>, vector<8x8xf32> -> vector<8x24xf32>
    %c0_80 = arith.constant 0 : index
    %c0_81 = arith.constant 0 : index
    %96 = vector.load %arg8[%c0_80, %c0_81] : memref<8x24xf32, #tpu.memory_space<vmem>>, vector<8x24xf32>
    tpu.vector_store %arg8[%c0_80, %c0_81], %95 {strides = array<i32>} : memref<8x24xf32, #tpu.memory_space<vmem>>, vector<8x24xf32>,
    return
  }
}

</mosaic_0001>

<llo_original>
// kernel: tpu_custom_call.1
$region0: #{tpu_custom_call.1}
  #allocation0 [shape = 'u32[]', space=smem, size = 0x4, offset = 0x4, fixed_abs, tag = 'smem constant byte address 0x4 - core index']
  #allocation1 [shape = 'u32[144,128]{1,0:T(1,128)}', space=vmem, size = 0x12000, scoped, tag = 'internal scratch']
  %s0 = inlined_call_operand.hbm [shape: f32[8,12], index: 0, kind: input, shape index: {}]
  %s1 = inlined_call_operand.hbm [shape: f32[8,6], index: 1, kind: input, shape index: {}]
  %s2 = inlined_call_operand.vmem [shape: f32[3,6,128], index: 2, kind: input, shape index: {}]
  %s3 = inlined_call_operand.vmem [shape: f32[3,1,128], index: 3, kind: input, shape index: {}]
  %s4 = inlined_call_operand.vmem [shape: f32[3,128,128], index: 4, kind: input, shape index: {}]
  %s5 = inlined_call_operand.vmem [shape: f32[3,1,128], index: 5, kind: input, shape index: {}]
  %s6 = inlined_call_operand.vmem [shape: f32[3,128,8], index: 6, kind: input, shape index: {}]
  %s7 = inlined_call_operand.vmem [shape: f32[3,1,8], index: 7, kind: input, shape index: {}]
  %s8 = inlined_call_operand.hbm [shape: f32[8,24], index: 8, kind: output, shape index: {}]
  %s9 = sld [smem:[#allocation0]]
  $region50: #{tpu_custom_call.1} parent=0
    _
  %s11 = ssub.s32 1, %s9
  %s12 = scalar_select 0, %s11, %s9
  $region1: #{tpu_custom_call.1} parent=0
    #allocation2 [shape = 'u8[4096]{0}', space=vmem, size = 0x1000, scoped, tag = 'input window, operand 0, single buffered']
    #allocation3 [shape = 's32[1]{0}', space=sflag, size = 0x4, scoped, tag = 'scoped memory for tpu_custom_call.1']
    #allocation4 [shape = 's32[1]{0}', space=sflag, size = 0x4, scoped, tag = 'scoped memory for tpu_custom_call.1']
    #allocation5 [shape = 'u8[4096]{0}', space=vmem, size = 0x1000, scoped, tag = 'input window, operand 1, single buffered']
    #allocation6 [shape = 's32[1]{0}', space=sflag, size = 0x4, scoped, tag = 'scoped memory for tpu_custom_call.1']
    #allocation7 [shape = 'u8[4096]{0}', space=vmem, size = 0x1000, scoped, tag = 'output window, operand 0, single buffered']
    %13 = vsyncpa [#allocation3], 0
    %14 = vsyncpa [#allocation6], 0
    %15 = vsyncpa [#allocation4], 0
    // Predicated region
    $region2: #{tpu_custom_call.1} parent=1 // pred_check
      _
    $region3: #{tpu_custom_call.1} parent=1 // pred_check_branch
      %17 = sbr.rel (0) target = $region5
    $region4: #{tpu_custom_call.1} parent=1 // pred_region
      %s19 = ssub.s32 128, 128
      %20 = vsyncadd [#allocation3], %s19
      %s22 = sshll.u32 [#allocation2], 4
      %s23 = int_to_ptr.vmem [resolvable:$true] %s22
      %25 = dma.hbm_to_vmem [thread:$0]  %s0, 128, %s23, [#allocation3]
    $region5: #{tpu_custom_call.1} parent=1 // pred_fallthru
      _
    // Predicated region
    $region6: #{tpu_custom_call.1} parent=1 // pred_check
      _
    $region7: #{tpu_custom_call.1} parent=1 // pred_check_branch
      %27 = sbr.rel (0) target = $region9
    $region8: #{tpu_custom_call.1} parent=1 // pred_region
      %s29 = ssub.s32 128, 128
      %30 = vsyncadd [#allocation6], %s29
      %s32 = sshll.u32 [#allocation5], 4
      %s33 = int_to_ptr.vmem [resolvable:$true] %s32
      %35 = dma.hbm_to_vmem [thread:$0]  %s1, 128, %s33, [#allocation6]
    $region9: #{tpu_custom_call.1} parent=1 // pred_fallthru
      _
    // Predicated region
    $region10: #{tpu_custom_call.1} parent=1 // pred_check
      _
    $region11: #{tpu_custom_call.1} parent=1 // pred_check_branch
      %37 = sbr.rel (0) target = $region13
    $region12: #{tpu_custom_call.1} parent=1 // pred_region
      _
    $region13: #{tpu_custom_call.1} parent=1 // pred_fallthru
      _
    // Predicated region
    $region14: #{tpu_custom_call.1} parent=1 // pred_check
      _
    $region15: #{tpu_custom_call.1} parent=1 // pred_check_branch
      %39 = sbr.rel (0) target = $region17
    $region16: #{tpu_custom_call.1} parent=1 // pred_region
      _
    $region17: #{tpu_custom_call.1} parent=1 // pred_fallthru
      _
    // Predicated region
    $region18: #{tpu_custom_call.1} parent=1 // pred_check
      _
    $region19: #{tpu_custom_call.1} parent=1 // pred_check_branch
      %41 = sbr.rel (0) target = $region21
    $region20: #{tpu_custom_call.1} parent=1 // pred_region
      _
    $region21: #{tpu_custom_call.1} parent=1 // pred_fallthru
      _
    // Predicated region
    $region22: #{tpu_custom_call.1} parent=1 // pred_check
      _
    $region23: #{tpu_custom_call.1} parent=1 // pred_check_branch
      %43 = sbr.rel (0) target = $region25
    $region24: #{tpu_custom_call.1} parent=1 // pred_region
      _
    $region25: #{tpu_custom_call.1} parent=1 // pred_fallthru
      _
    // Predicated region
    $region26: #{tpu_custom_call.1} parent=1 // pred_check
      _
    $region27: #{tpu_custom_call.1} parent=1 // pred_check_branch
      %45 = sbr.rel (0) target = $region29
    $region28: #{tpu_custom_call.1} parent=1 // pred_region
      _
    $region29: #{tpu_custom_call.1} parent=1 // pred_fallthru
      _
    // Predicated region
    $region30: #{tpu_custom_call.1} parent=1 // pred_check
      _
    $region31: #{tpu_custom_call.1} parent=1 // pred_check_branch
      %47 = sbr.rel (0) target = $region33
    $region32: #{tpu_custom_call.1} parent=1 // pred_region
      _
    $region33: #{tpu_custom_call.1} parent=1 // pred_fallthru
      _
    // Predicated region
    $region34: #{tpu_custom_call.1} parent=1 // pred_check
      _
    $region35: #{tpu_custom_call.1} parent=1 // pred_check_branch
      %49 = sbr.rel (0) target = $region37
    $region36: #{tpu_custom_call.1} parent=1 // pred_region
      %50 = dma.done [#allocation3], 128
    $region37: #{tpu_custom_call.1} parent=1 // pred_fallthru
      _
    // Predicated region
    $region38: #{tpu_custom_call.1} parent=1 // pred_check
      _
    $region39: #{tpu_custom_call.1} parent=1 // pred_check_branch
      %52 = sbr.rel (0) target = $region41
    $region40: #{tpu_custom_call.1} parent=1 // pred_region
      %53 = dma.done [#allocation6], 128
    $region41: #{tpu_custom_call.1} parent=1 // pred_fallthru
      _
    %v54 = vld [vmem:[#allocation2] sm:$0xff]
    %v55 = vld [vmem:[#allocation5] sm:$0xff]
    %v56 = vld [vmem:[%s2] sm:$0xf]
    %v57 = vld [vmem:[%s2 + $0x4] sm:$0x3]
    %vm58 = vcmask 15360
    %v60 = vsel %vm58, %v55, 0
    %vm62 = vcmask 1041408
    %v64 = vsel %vm62, %v57, 0
    %66 = vmatprep.subr.mxu0 0.0
    %67 = vmatpush1.msra.mxu0 0.0
    %68 = vmatprep.subr.mxu0 0.0
    %69 = vmatpush1.msra.mxu0 0.0
    %70 = vmatprep.subr.mxu0 0.0
    %71 = vmatpush1.msra.mxu0 0.0
    %72 = vmatprep.subr.mxu0 0.0
    %73 = vmatpush1.msra.mxu0 0.0
    %74 = vmatprep.subr.mxu0 0.0
    %75 = vmatpush1.msra.mxu0 0.0
    %76 = vmatprep.subr.mxu0 0.0
    %77 = vmatpush1.msra.mxu0 0.0
    %78 = vmatprep.subr.mxu0 0.0
    %79 = vmatpush1.msra.mxu0 0.0
    %80 = vmatprep.subr.mxu0 0.0
    %81 = vmatpush1.msra.mxu0 0.0
    %82 = vmatprep.subr.mxu0 0.0
    %83 = vmatpush1.msra.mxu0 0.0
    %84 = vmatprep.subr.mxu0 0.0
    %85 = vmatpush1.msra.mxu0 0.0
    %86 = vmatprep.subr.mxu0 0.0
    %87 = vmatpush1.msra.mxu0 0.0
    %88 = vmatprep.subr.mxu0 0.0
    %89 = vmatpush1.msra.mxu0 0.0
    %90 = vmatprep.subr.mxu0 0.0
    %91 = vmatpush1.msra.mxu0 0.0
    %92 = vmatprep.subr.mxu0 0.0
    %93 = vmatpush1.msra.mxu0 0.0
    %94 = vmatprep.subr.mxu0 0.0
    %95 = vmatpush1.msra.mxu0 0.0
    %96 = vmatprep.subr.mxu0 0.0
    %97 = vmatpush1.msra.mxu0 %v64
    %98 = vmatprep.subr.mxu0 0.0
    %99 = vmatpush2.msra.mxu0 0.0
    %100 = vmatprep.subr.mxu0 0.0
    %101 = vmatpush2.msra.mxu0 0.0
    %102 = vmatprep.subr.mxu0 0.0
    %103 = vmatpush2.msra.mxu0 0.0
    %104 = vmatprep.subr.mxu0 0.0
    %105 = vmatpush2.msra.mxu0 0.0
    %106 = vmatprep.subr.mxu0 0.0
    %107 = vmatpush2.msra.mxu0 0.0
    %108 = vmatprep.subr.mxu0 0.0
    %109 = vmatpush2.msra.mxu0 0.0
    %110 = vmatprep.subr.mxu0 0.0
    %111 = vmatpush2.msra.mxu0 0.0
    %112 = vmatprep.subr.mxu0 0.0
    %113 = vmatpush2.msra.mxu0 0.0
    %114 = vmatprep.subr.mxu0 0.0
    %115 = vmatpush2.msra.mxu0 0.0
    %116 = vmatprep.subr.mxu0 0.0
    %117 = vmatpush2.msra.mxu0 0.0
    %118 = vmatprep.subr.mxu0 0.0
    %119 = vmatpush2.msra.mxu0 0.0
    %120 = vmatprep.subr.mxu0 0.0
    %121 = vmatpush2.msra.mxu0 0.0
    %122 = vmatprep.subr.mxu0 0.0
    %123 = vmatpush2.msra.mxu0 0.0
    %124 = vmatprep.subr.mxu0 0.0
    %125 = vmatpush2.msra.mxu0 0.0
    %126 = vmatprep.subr.mxu0 0.0
    %127 = vmatpush2.msra.mxu0 0.0
    %128 = vmatprep.subr.mxu0 0.0
    %129 = vmatpush2.msra.mxu0 0.0
    %130 = vmatprep.mubr.f32.mxu0 0.0
    %131 = vmatmul.mubr.f32.gmra.mxu0 %v60
    %v132 = vpop.f32.mrf.mxu0
    %v133 = vadd.f32 0.0, %v132
    %v134 = vpop.f32.mrf.mxu0
    %135 = vdwg.mxu0
    %vm136 = vcmask 31744
    %v138 = vsel %vm136, %v54, 0
    %vm140 = vcmask 1043456
    %v142 = vsel %vm140, %v56, 0
    %144 = vmatprep.subr.mxu0 0.0
    %145 = vmatpush1.msra.mxu0 0.0
    %146 = vmatprep.subr.mxu0 0.0
    %147 = vmatpush1.msra.mxu0 0.0
    %148 = vmatprep.subr.mxu0 0.0
    %149 = vmatpush1.msra.mxu0 0.0
    %150 = vmatprep.subr.mxu0 0.0
    %151 = vmatpush1.msra.mxu0 0.0
    %152 = vmatprep.subr.mxu0 0.0
    %153 = vmatpush1.msra.mxu0 0.0
    %154 = vmatprep.subr.mxu0 0.0
    %155 = vmatpush1.msra.mxu0 0.0
    %156 = vmatprep.subr.mxu0 0.0
    %157 = vmatpush1.msra.mxu0 0.0
    %158 = vmatprep.subr.mxu0 0.0
    %159 = vmatpush1.msra.mxu0 0.0
    %160 = vmatprep.subr.mxu0 0.0
    %161 = vmatpush1.msra.mxu0 0.0
    %162 = vmatprep.subr.mxu0 0.0
    %163 = vmatpush1.msra.mxu0 0.0
    %164 = vmatprep.subr.mxu0 0.0
    %165 = vmatpush1.msra.mxu0 0.0
    %166 = vmatprep.subr.mxu0 0.0
    %167 = vmatpush1.msra.mxu0 0.0
    %168 = vmatprep.subr.mxu0 0.0
    %169 = vmatpush1.msra.mxu0 0.0
    %170 = vmatprep.subr.mxu0 0.0
    %171 = vmatpush1.msra.mxu0 0.0
    %172 = vmatprep.subr.mxu0 0.0
    %173 = vmatpush1.msra.mxu0 0.0
    %174 = vmatprep.subr.mxu0 0.0
    %175 = vmatpush1.msra.mxu0 %v142
    %176 = vmatprep.subr.mxu0 0.0
    %177 = vmatpush2.msra.mxu0 0.0
    %178 = vmatprep.subr.mxu0 0.0
    %179 = vmatpush2.msra.mxu0 0.0
    %180 = vmatprep.subr.mxu0 0.0
    %181 = vmatpush2.msra.mxu0 0.0
    %182 = vmatprep.subr.mxu0 0.0
    %183 = vmatpush2.msra.mxu0 0.0
    %184 = vmatprep.subr.mxu0 0.0
    %185 = vmatpush2.msra.mxu0 0.0
    %186 = vmatprep.subr.mxu0 0.0
    %187 = vmatpush2.msra.mxu0 0.0
    %188 = vmatprep.subr.mxu0 0.0
    %189 = vmatpush2.msra.mxu0 0.0
    %190 = vmatprep.subr.mxu0 0.0
    %191 = vmatpush2.msra.mxu0 0.0
    %192 = vmatprep.subr.mxu0 0.0
    %193 = vmatpush2.msra.mxu0 0.0
    %194 = vmatprep.subr.mxu0 0.0
    %195 = vmatpush2.msra.mxu0 0.0
    %196 = vmatprep.subr.mxu0 0.0
    %197 = vmatpush2.msra.mxu0 0.0
    %198 = vmatprep.subr.mxu0 0.0
    %199 = vmatpush2.msra.mxu0 0.0
    %200 = vmatprep.subr.mxu0 0.0
    %201 = vmatpush2.msra.mxu0 0.0
    %202 = vmatprep.subr.mxu0 0.0
    %203 = vmatpush2.msra.mxu0 0.0
    %204 = vmatprep.subr.mxu0 0.0
    %205 = vmatpush2.msra.mxu0 0.0
    %206 = vmatprep.subr.mxu0 0.0
    %207 = vmatpush2.msra.mxu0 0.0
    %208 = vmatprep.mubr.f32.mxu0 0.0
    %209 = vmatmul.mubr.f32.gmra.mxu0 %v138
    %v210 = vpop.f32.mrf.mxu0
    %v211 = vadd.f32 %v133, %v210
    %v212 = vpop.f32.mrf.mxu0
    %213 = vdwg.mxu0
    %v214 = vld [vmem:[%s3] sm:$0x1]
    %v216 = vlaneseq
    %v217 = vshrl.u32 %v216, 7
    %v218 = vsub.s32 0, %v217
    %v219 = vrot.slane %v214, %v218
    %v221 = vadd.f32 %v211, %v219
    %v222 = vmax.f32 %v221, 0.0
    %v223 = vld [vmem:[%s4] sm:$0xff]
    %v224 = vld [vmem:[%s4 + $0x8] sm:$0xff]
    %v225 = vld [vmem:[%s4 + $0x10] sm:$0xff]
    %v226 = vld [vmem:[%s4 + $0x18] sm:$0xff]
    %v227 = vld [vmem:[%s4 + $0x20] sm:$0xff]
    %v228 = vld [vmem:[%s4 + $0x28] sm:$0xff]
    %v229 = vld [vmem:[%s4 + $0x30] sm:$0xff]
    %v230 = vld [vmem:[%s4 + $0x38] sm:$0xff]
    %v231 = vld [vmem:[%s4 + $0x40] sm:$0xff]
    %v232 = vld [vmem:[%s4 + $0x48] sm:$0xff]
    %v233 = vld [vmem:[%s4 + $0x50] sm:$0xff]
    %v234 = vld [vmem:[%s4 + $0x58] sm:$0xff]
    %v235 = vld [vmem:[%s4 + $0x60] sm:$0xff]
    %v236 = vld [vmem:[%s4 + $0x68] sm:$0xff]
    %v237 = vld [vmem:[%s4 + $0x70] sm:$0xff]
    %v238 = vld [vmem:[%s4 + $0x78] sm:$0xff]
    %v239 = vld [vmem:[%s5] sm:$0x1]
    %v241 = vlaneseq
    %v242 = vshrl.u32 %v241, 7
    %v243 = vsub.s32 0, %v242
    %v244 = vrot.slane %v239, %v243
    %246 = vmatprep.subr.mxu0 0.0
    %247 = vmatpush1.msra.mxu0 %v238
    %248 = vmatprep.subr.mxu0 0.0
    %249 = vmatpush1.msra.mxu0 %v237
    %250 = vmatprep.subr.mxu0 0.0
    %251 = vmatpush1.msra.mxu0 %v236
    %252 = vmatprep.subr.mxu0 0.0
    %253 = vmatpush1.msra.mxu0 %v235
    %254 = vmatprep.subr.mxu0 0.0
    %255 = vmatpush1.msra.mxu0 %v234
    %256 = vmatprep.subr.mxu0 0.0
    %257 = vmatpush1.msra.mxu0 %v233
    %258 = vmatprep.subr.mxu0 0.0
    %259 = vmatpush1.msra.mxu0 %v232
    %260 = vmatprep.subr.mxu0 0.0
    %261 = vmatpush1.msra.mxu0 %v231
    %262 = vmatprep.subr.mxu0 0.0
    %263 = vmatpush1.msra.mxu0 %v230
    %264 = vmatprep.subr.mxu0 0.0
    %265 = vmatpush1.msra.mxu0 %v229
    %266 = vmatprep.subr.mxu0 0.0
    %267 = vmatpush1.msra.mxu0 %v228
    %268 = vmatprep.subr.mxu0 0.0
    %269 = vmatpush1.msra.mxu0 %v227
    %270 = vmatprep.subr.mxu0 0.0
    %271 = vmatpush1.msra.mxu0 %v226
    %272 = vmatprep.subr.mxu0 0.0
    %273 = vmatpush1.msra.mxu0 %v225
    %274 = vmatprep.subr.mxu0 0.0
    %275 = vmatpush1.msra.mxu0 %v224
    %276 = vmatprep.subr.mxu0 0.0
    %277 = vmatpush1.msra.mxu0 %v223
    %278 = vmatprep.subr.mxu0 0.0
    %279 = vmatpush2.msra.mxu0 0.0
    %280 = vmatprep.subr.mxu0 0.0
    %281 = vmatpush2.msra.mxu0 0.0
    %282 = vmatprep.subr.mxu0 0.0
    %283 = vmatpush2.msra.mxu0 0.0
    %284 = vmatprep.subr.mxu0 0.0
    %285 = vmatpush2.msra.mxu0 0.0
    %286 = vmatprep.subr.mxu0 0.0
    %287 = vmatpush2.msra.mxu0 0.0
    %288 = vmatprep.subr.mxu0 0.0
    %289 = vmatpush2.msra.mxu0 0.0
    %290 = vmatprep.subr.mxu0 0.0
    %291 = vmatpush2.msra.mxu0 0.0
    %292 = vmatprep.subr.mxu0 0.0
    %293 = vmatpush2.msra.mxu0 0.0
    %294 = vmatprep.subr.mxu0 0.0
    %295 = vmatpush2.msra.mxu0 0.0
    %296 = vmatprep.subr.mxu0 0.0
    %297 = vmatpush2.msra.mxu0 0.0
    %298 = vmatprep.subr.mxu0 0.0
    %299 = vmatpush2.msra.mxu0 0.0
    %300 = vmatprep.subr.mxu0 0.0
    %301 = vmatpush2.msra.mxu0 0.0
    %302 = vmatprep.subr.mxu0 0.0
    %303 = vmatpush2.msra.mxu0 0.0
    %304 = vmatprep.subr.mxu0 0.0
    %305 = vmatpush2.msra.mxu0 0.0
    %306 = vmatprep.subr.mxu0 0.0
    %307 = vmatpush2.msra.mxu0 0.0
    %308 = vmatprep.subr.mxu0 0.0
    %309 = vmatpush2.msra.mxu0 0.0
    %310 = vmatprep.mubr.f32.mxu0 0.0
    %311 = vmatmul.mubr.f32.gmra.mxu0 %v222
    %v312 = vpop.f32.mrf.mxu0
    %v313 = vadd.f32 %v244, %v312
    %v314 = vpop.f32.mrf.mxu0
    %315 = vdwg.mxu0
    %v316 = vmax.f32 %v313, 0.0
    %v317 = vld [vmem:[%s6] sm:$0xff]
    %v318 = vld [vmem:[%s6 + $0x8] sm:$0xff]
    %v319 = vld [vmem:[%s6 + $0x10] sm:$0xff]
    %v320 = vld [vmem:[%s6 + $0x18] sm:$0xff]
    %v321 = vld [vmem:[%s6 + $0x20] sm:$0xff]
    %v322 = vld [vmem:[%s6 + $0x28] sm:$0xff]
    %v323 = vld [vmem:[%s6 + $0x30] sm:$0xff]
    %v324 = vld [vmem:[%s6 + $0x38] sm:$0xff]
    %v325 = vld [vmem:[%s6 + $0x40] sm:$0xff]
    %v326 = vld [vmem:[%s6 + $0x48] sm:$0xff]
    %v327 = vld [vmem:[%s6 + $0x50] sm:$0xff]
    %v328 = vld [vmem:[%s6 + $0x58] sm:$0xff]
    %v329 = vld [vmem:[%s6 + $0x60] sm:$0xff]
    %v330 = vld [vmem:[%s6 + $0x68] sm:$0xff]
    %v331 = vld [vmem:[%s6 + $0x70] sm:$0xff]
    %v332 = vld [vmem:[%s6 + $0x78] sm:$0xff]
    %v333 = vld [vmem:[%s7] sm:$0x1]
    %v335 = vlaneseq
    %v336 = vshrl.u32 %v335, 7
    %v337 = vsub.s32 0, %v336
    %v338 = vrot.slane %v333, %v337
    %340 = vmatprep.subr.mxu0 0.0
    %341 = vmatpush1.msra.mxu0 %v332
    %342 = vmatprep.subr.mxu0 0.0
    %343 = vmatpush1.msra.mxu0 %v331
    %344 = vmatprep.subr.mxu0 0.0
    %345 = vmatpush1.msra.mxu0 %v330
    %346 = vmatprep.subr.mxu0 0.0
    %347 = vmatpush1.msra.mxu0 %v329
    %348 = vmatprep.subr.mxu0 0.0
    %349 = vmatpush1.msra.mxu0 %v328
    %350 = vmatprep.subr.mxu0 0.0
    %351 = vmatpush1.msra.mxu0 %v327
    %352 = vmatprep.subr.mxu0 0.0
    %353 = vmatpush1.msra.mxu0 %v326
    %354 = vmatprep.subr.mxu0 0.0
    %355 = vmatpush1.msra.mxu0 %v325
    %356 = vmatprep.subr.mxu0 0.0
    %357 = vmatpush1.msra.mxu0 %v324
    %358 = vmatprep.subr.mxu0 0.0
    %359 = vmatpush1.msra.mxu0 %v323
    %360 = vmatprep.subr.mxu0 0.0
    %361 = vmatpush1.msra.mxu0 %v322
    %362 = vmatprep.subr.mxu0 0.0
    %363 = vmatpush1.msra.mxu0 %v321
    %364 = vmatprep.subr.mxu0 0.0
    %365 = vmatpush1.msra.mxu0 %v320
    %366 = vmatprep.subr.mxu0 0.0
    %367 = vmatpush1.msra.mxu0 %v319
    %368 = vmatprep.subr.mxu0 0.0
    %369 = vmatpush1.msra.mxu0 %v318
    %370 = vmatprep.subr.mxu0 0.0
    %371 = vmatpush1.msra.mxu0 %v317
    %372 = vmatprep.subr.mxu0 0.0
    %373 = vmatpush2.msra.mxu0 0.0
    %374 = vmatprep.subr.mxu0 0.0
    %375 = vmatpush2.msra.mxu0 0.0
    %376 = vmatprep.subr.mxu0 0.0
    %377 = vmatpush2.msra.mxu0 0.0
    %378 = vmatprep.subr.mxu0 0.0
    %379 = vmatpush2.msra.mxu0 0.0
    %380 = vmatprep.subr.mxu0 0.0
    %381 = vmatpush2.msra.mxu0 0.0
    %382 = vmatprep.subr.mxu0 0.0
    %383 = vmatpush2.msra.mxu0 0.0
    %384 = vmatprep.subr.mxu0 0.0
    %385 = vmatpush2.msra.mxu0 0.0
    %386 = vmatprep.subr.mxu0 0.0
    %387 = vmatpush2.msra.mxu0 0.0
    %388 = vmatprep.subr.mxu0 0.0
    %389 = vmatpush2.msra.mxu0 0.0
    %390 = vmatprep.subr.mxu0 0.0
    %391 = vmatpush2.msra.mxu0 0.0
    %392 = vmatprep.subr.mxu0 0.0
    %393 = vmatpush2.msra.mxu0 0.0
    %394 = vmatprep.subr.mxu0 0.0
    %395 = vmatpush2.msra.mxu0 0.0
    %396 = vmatprep.subr.mxu0 0.0
    %397 = vmatpush2.msra.mxu0 0.0
    %398 = vmatprep.subr.mxu0 0.0
    %399 = vmatpush2.msra.mxu0 0.0
    %400 = vmatprep.subr.mxu0 0.0
    %401 = vmatpush2.msra.mxu0 0.0
    %402 = vmatprep.subr.mxu0 0.0
    %403 = vmatpush2.msra.mxu0 0.0
    %404 = vmatprep.mubr.f32.mxu0 0.0
    %405 = vmatmul.mubr.f32.gmra.mxu0 %v316
    %v406 = vpop.f32.mrf.mxu0
    %v407 = vadd.f32 %v338, %v406
    %v408 = vpop.f32.mrf.mxu0
    %409 = vdwg.mxu0
    %s410 = scalar_lea.vmem %s2, 8
    %v411 = vld [vmem:[%s410] sm:$0xf]
    %v412 = vld [vmem:[%s410 + $0x4] sm:$0x3]
    %413 = vrot.lane.b32.xlu0 %v55, 126
    %v414 = vpop.permute.xlu0 %413
    %v415 = vsel %vm58, %v414, 0
    %v418 = vsel %vm62, %v412, 0
    %420 = vmatprep.subr.mxu0 0.0
    %421 = vmatpush1.msra.mxu0 0.0
    %422 = vmatprep.subr.mxu0 0.0
    %423 = vmatpush1.msra.mxu0 0.0
    %424 = vmatprep.subr.mxu0 0.0
    %425 = vmatpush1.msra.mxu0 0.0
    %426 = vmatprep.subr.mxu0 0.0
    %427 = vmatpush1.msra.mxu0 0.0
    %428 = vmatprep.subr.mxu0 0.0
    %429 = vmatpush1.msra.mxu0 0.0
    %430 = vmatprep.subr.mxu0 0.0
    %431 = vmatpush1.msra.mxu0 0.0
    %432 = vmatprep.subr.mxu0 0.0
    %433 = vmatpush1.msra.mxu0 0.0
    %434 = vmatprep.subr.mxu0 0.0
    %435 = vmatpush1.msra.mxu0 0.0
    %436 = vmatprep.subr.mxu0 0.0
    %437 = vmatpush1.msra.mxu0 0.0
    %438 = vmatprep.subr.mxu0 0.0
    %439 = vmatpush1.msra.mxu0 0.0
    %440 = vmatprep.subr.mxu0 0.0
    %441 = vmatpush1.msra.mxu0 0.0
    %442 = vmatprep.subr.mxu0 0.0
    %443 = vmatpush1.msra.mxu0 0.0
    %444 = vmatprep.subr.mxu0 0.0
    %445 = vmatpush1.msra.mxu0 0.0
    %446 = vmatprep.subr.mxu0 0.0
    %447 = vmatpush1.msra.mxu0 0.0
    %448 = vmatprep.subr.mxu0 0.0
    %449 = vmatpush1.msra.mxu0 0.0
    %450 = vmatprep.subr.mxu0 0.0
    %451 = vmatpush1.msra.mxu0 %v418
    %452 = vmatprep.subr.mxu0 0.0
    %453 = vmatpush2.msra.mxu0 0.0
    %454 = vmatprep.subr.mxu0 0.0
    %455 = vmatpush2.msra.mxu0 0.0
    %456 = vmatprep.subr.mxu0 0.0
    %457 = vmatpush2.msra.mxu0 0.0
    %458 = vmatprep.subr.mxu0 0.0
    %459 = vmatpush2.msra.mxu0 0.0
    %460 = vmatprep.subr.mxu0 0.0
    %461 = vmatpush2.msra.mxu0 0.0
    %462 = vmatprep.subr.mxu0 0.0
    %463 = vmatpush2.msra.mxu0 0.0
    %464 = vmatprep.subr.mxu0 0.0
    %465 = vmatpush2.msra.mxu0 0.0
    %466 = vmatprep.subr.mxu0 0.0
    %467 = vmatpush2.msra.mxu0 0.0
    %468 = vmatprep.subr.mxu0 0.0
    %469 = vmatpush2.msra.mxu0 0.0
    %470 = vmatprep.subr.mxu0 0.0
    %471 = vmatpush2.msra.mxu0 0.0
    %472 = vmatprep.subr.mxu0 0.0
    %473 = vmatpush2.msra.mxu0 0.0
    %474 = vmatprep.subr.mxu0 0.0
    %475 = vmatpush2.msra.mxu0 0.0
    %476 = vmatprep.subr.mxu0 0.0
    %477 = vmatpush2.msra.mxu0 0.0
    %478 = vmatprep.subr.mxu0 0.0
    %479 = vmatpush2.msra.mxu0 0.0
    %480 = vmatprep.subr.mxu0 0.0
    %481 = vmatpush2.msra.mxu0 0.0
    %482 = vmatprep.subr.mxu0 0.0
    %483 = vmatpush2.msra.mxu0 0.0
    %484 = vmatprep.mubr.f32.mxu0 0.0
    %485 = vmatmul.mubr.f32.gmra.mxu0 %v415
    %v486 = vpop.f32.mrf.mxu0
    %v487 = vadd.f32 0.0, %v486
    %v488 = vpop.f32.mrf.mxu0
    %489 = vdwg.mxu0
    %490 = vrot.lane.b32.xlu0 %v54, 124
    %v491 = vpop.permute.xlu0 %490
    %v492 = vsel %vm136, %v491, 0
    %v495 = vsel %vm140, %v411, 0
    %497 = vmatprep.subr.mxu0 0.0
    %498 = vmatpush1.msra.mxu0 0.0
    %499 = vmatprep.subr.mxu0 0.0
    %500 = vmatpush1.msra.mxu0 0.0
    %501 = vmatprep.subr.mxu0 0.0
    %502 = vmatpush1.msra.mxu0 0.0
    %503 = vmatprep.subr.mxu0 0.0
    %504 = vmatpush1.msra.mxu0 0.0
    %505 = vmatprep.subr.mxu0 0.0
    %506 = vmatpush1.msra.mxu0 0.0
    %507 = vmatprep.subr.mxu0 0.0
    %508 = vmatpush1.msra.mxu0 0.0
    %509 = vmatprep.subr.mxu0 0.0
    %510 = vmatpush1.msra.mxu0 0.0
    %511 = vmatprep.subr.mxu0 0.0
    %512 = vmatpush1.msra.mxu0 0.0
    %513 = vmatprep.subr.mxu0 0.0
    %514 = vmatpush1.msra.mxu0 0.0
    %515 = vmatprep.subr.mxu0 0.0
    %516 = vmatpush1.msra.mxu0 0.0
    %517 = vmatprep.subr.mxu0 0.0
    %518 = vmatpush1.msra.mxu0 0.0
    %519 = vmatprep.subr.mxu0 0.0
    %520 = vmatpush1.msra.mxu0 0.0
    %521 = vmatprep.subr.mxu0 0.0
    %522 = vmatpush1.msra.mxu0 0.0
    %523 = vmatprep.subr.mxu0 0.0
    %524 = vmatpush1.msra.mxu0 0.0
    %525 = vmatprep.subr.mxu0 0.0
    %526 = vmatpush1.msra.mxu0 0.0
    %527 = vmatprep.subr.mxu0 0.0
    %528 = vmatpush1.msra.mxu0 %v495
    %529 = vmatprep.subr.mxu0 0.0
    %530 = vmatpush2.msra.mxu0 0.0
    %531 = vmatprep.subr.mxu0 0.0
    %532 = vmatpush2.msra.mxu0 0.0
    %533 = vmatprep.subr.mxu0 0.0
    %534 = vmatpush2.msra.mxu0 0.0
    %535 = vmatprep.subr.mxu0 0.0
    %536 = vmatpush2.msra.mxu0 0.0
    %537 = vmatprep.subr.mxu0 0.0
    %538 = vmatpush2.msra.mxu0 0.0
    %539 = vmatprep.subr.mxu0 0.0
    %540 = vmatpush2.msra.mxu0 0.0
    %541 = vmatprep.subr.mxu0 0.0
    %542 = vmatpush2.msra.mxu0 0.0
    %543 = vmatprep.subr.mxu0 0.0
    %544 = vmatpush2.msra.mxu0 0.0
    %545 = vmatprep.subr.mxu0 0.0
    %546 = vmatpush2.msra.mxu0 0.0
    %547 = vmatprep.subr.mxu0 0.0
    %548 = vmatpush2.msra.mxu0 0.0
    %549 = vmatprep.subr.mxu0 0.0
    %550 = vmatpush2.msra.mxu0 0.0
    %551 = vmatprep.subr.mxu0 0.0
    %552 = vmatpush2.msra.mxu0 0.0
    %553 = vmatprep.subr.mxu0 0.0
    %554 = vmatpush2.msra.mxu0 0.0
    %555 = vmatprep.subr.mxu0 0.0
    %556 = vmatpush2.msra.mxu0 0.0
    %557 = vmatprep.subr.mxu0 0.0
    %558 = vmatpush2.msra.mxu0 0.0
    %559 = vmatprep.subr.mxu0 0.0
    %560 = vmatpush2.msra.mxu0 0.0
    %561 = vmatprep.mubr.f32.mxu0 0.0
    %562 = vmatmul.mubr.f32.gmra.mxu0 %v492
    %v563 = vpop.f32.mrf.mxu0
    %v564 = vadd.f32 %v487, %v563
    %v565 = vpop.f32.mrf.mxu0
    %566 = vdwg.mxu0
    %s567 = scalar_lea.vmem %s3, 1
    %v568 = vld [vmem:[%s567] sm:$0x1]
    %v570 = vlaneseq
    %v571 = vshrl.u32 %v570, 7
    %v572 = vsub.s32 0, %v571
    %v573 = vrot.slane %v568, %v572
    %v575 = vadd.f32 %v564, %v573
    %v576 = vmax.f32 %v575, 0.0
    %s577 = scalar_lea.vmem %s4, 128
    %v578 = vld [vmem:[%s577] sm:$0xff]
    %v579 = vld [vmem:[%s577 + $0x8] sm:$0xff]
    %v580 = vld [vmem:[%s577 + $0x10] sm:$0xff]
    %v581 = vld [vmem:[%s577 + $0x18] sm:$0xff]
    %v582 = vld [vmem:[%s577 + $0x20] sm:$0xff]
    %v583 = vld [vmem:[%s577 + $0x28] sm:$0xff]
    %v584 = vld [vmem:[%s577 + $0x30] sm:$0xff]
    %v585 = vld [vmem:[%s577 + $0x38] sm:$0xff]
    %v586 = vld [vmem:[%s577 + $0x40] sm:$0xff]
    %v587 = vld [vmem:[%s577 + $0x48] sm:$0xff]
    %v588 = vld [vmem:[%s577 + $0x50] sm:$0xff]
    %v589 = vld [vmem:[%s577 + $0x58] sm:$0xff]
    %v590 = vld [vmem:[%s577 + $0x60] sm:$0xff]
    %v591 = vld [vmem:[%s577 + $0x68] sm:$0xff]
    %v592 = vld [vmem:[%s577 + $0x70] sm:$0xff]
    %v593 = vld [vmem:[%s577 + $0x78] sm:$0xff]
    %s594 = scalar_lea.vmem %s5, 1
    %v595 = vld [vmem:[%s594] sm:$0x1]
    %v597 = vlaneseq
    %v598 = vshrl.u32 %v597, 7
    %v599 = vsub.s32 0, %v598
    %v600 = vrot.slane %v595, %v599
    %602 = vmatprep.subr.mxu0 0.0
    %603 = vmatpush1.msra.mxu0 %v593
    %604 = vmatprep.subr.mxu0 0.0
    %605 = vmatpush1.msra.mxu0 %v592
    %606 = vmatprep.subr.mxu0 0.0
    %607 = vmatpush1.msra.mxu0 %v591
    %608 = vmatprep.subr.mxu0 0.0
    %609 = vmatpush1.msra.mxu0 %v590
    %610 = vmatprep.subr.mxu0 0.0
    %611 = vmatpush1.msra.mxu0 %v589
    %612 = vmatprep.subr.mxu0 0.0
    %613 = vmatpush1.msra.mxu0 %v588
    %614 = vmatprep.subr.mxu0 0.0
    %615 = vmatpush1.msra.mxu0 %v587
    %616 = vmatprep.subr.mxu0 0.0
    %617 = vmatpush1.msra.mxu0 %v586
    %618 = vmatprep.subr.mxu0 0.0
    %619 = vmatpush1.msra.mxu0 %v585
    %620 = vmatprep.subr.mxu0 0.0
    %621 = vmatpush1.msra.mxu0 %v584
    %622 = vmatprep.subr.mxu0 0.0
    %623 = vmatpush1.msra.mxu0 %v583
    %624 = vmatprep.subr.mxu0 0.0
    %625 = vmatpush1.msra.mxu0 %v582
    %626 = vmatprep.subr.mxu0 0.0
    %627 = vmatpush1.msra.mxu0 %v581
    %628 = vmatprep.subr.mxu0 0.0
    %629 = vmatpush1.msra.mxu0 %v580
    %630 = vmatprep.subr.mxu0 0.0
    %631 = vmatpush1.msra.mxu0 %v579
    %632 = vmatprep.subr.mxu0 0.0
    %633 = vmatpush1.msra.mxu0 %v578
    %634 = vmatprep.subr.mxu0 0.0
    %635 = vmatpush2.msra.mxu0 0.0
    %636 = vmatprep.subr.mxu0 0.0
    %637 = vmatpush2.msra.mxu0 0.0
    %638 = vmatprep.subr.mxu0 0.0
    %639 = vmatpush2.msra.mxu0 0.0
    %640 = vmatprep.subr.mxu0 0.0
    %641 = vmatpush2.msra.mxu0 0.0
    %642 = vmatprep.subr.mxu0 0.0
    %643 = vmatpush2.msra.mxu0 0.0
    %644 = vmatprep.subr.mxu0 0.0
    %645 = vmatpush2.msra.mxu0 0.0
    %646 = vmatprep.subr.mxu0 0.0
    %647 = vmatpush2.msra.mxu0 0.0
    %648 = vmatprep.subr.mxu0 0.0
    %649 = vmatpush2.msra.mxu0 0.0
    %650 = vmatprep.subr.mxu0 0.0
    %651 = vmatpush2.msra.mxu0 0.0
    %652 = vmatprep.subr.mxu0 0.0
    %653 = vmatpush2.msra.mxu0 0.0
    %654 = vmatprep.subr.mxu0 0.0
    %655 = vmatpush2.msra.mxu0 0.0
    %656 = vmatprep.subr.mxu0 0.0
    %657 = vmatpush2.msra.mxu0 0.0
    %658 = vmatprep.subr.mxu0 0.0
    %659 = vmatpush2.msra.mxu0 0.0
    %660 = vmatprep.subr.mxu0 0.0
    %661 = vmatpush2.msra.mxu0 0.0
    %662 = vmatprep.subr.mxu0 0.0
    %663 = vmatpush2.msra.mxu0 0.0
    %664 = vmatprep.subr.mxu0 0.0
    %665 = vmatpush2.msra.mxu0 0.0
    %666 = vmatprep.mubr.f32.mxu0 0.0
    %667 = vmatmul.mubr.f32.gmra.mxu0 %v576
    %v668 = vpop.f32.mrf.mxu0
    %v669 = vadd.f32 %v600, %v668
    %v670 = vpop.f32.mrf.mxu0
    %671 = vdwg.mxu0
    %v672 = vmax.f32 %v669, 0.0
    %s673 = scalar_lea.vmem %s6, 128
    %v674 = vld [vmem:[%s673] sm:$0xff]
    %v675 = vld [vmem:[%s673 + $0x8] sm:$0xff]
    %v676 = vld [vmem:[%s673 + $0x10] sm:$0xff]
    %v677 = vld [vmem:[%s673 + $0x18] sm:$0xff]
    %v678 = vld [vmem:[%s673 + $0x20] sm:$0xff]
    %v679 = vld [vmem:[%s673 + $0x28] sm:$0xff]
    %v680 = vld [vmem:[%s673 + $0x30] sm:$0xff]
    %v681 = vld [vmem:[%s673 + $0x38] sm:$0xff]
    %v682 = vld [vmem:[%s673 + $0x40] sm:$0xff]
    %v683 = vld [vmem:[%s673 + $0x48] sm:$0xff]
    %v684 = vld [vmem:[%s673 + $0x50] sm:$0xff]
    %v685 = vld [vmem:[%s673 + $0x58] sm:$0xff]
    %v686 = vld [vmem:[%s673 + $0x60] sm:$0xff]
    %v687 = vld [vmem:[%s673 + $0x68] sm:$0xff]
    %v688 = vld [vmem:[%s673 + $0x70] sm:$0xff]
    %v689 = vld [vmem:[%s673 + $0x78] sm:$0xff]
    %s690 = scalar_lea.vmem %s7, 1
    %v691 = vld [vmem:[%s690] sm:$0x1]
    %v693 = vlaneseq
    %v694 = vshrl.u32 %v693, 7
    %v695 = vsub.s32 0, %v694
    %v696 = vrot.slane %v691, %v695
    %698 = vmatprep.subr.mxu0 0.0
    %699 = vmatpush1.msra.mxu0 %v689
    %700 = vmatprep.subr.mxu0 0.0
    %701 = vmatpush1.msra.mxu0 %v688
    %702 = vmatprep.subr.mxu0 0.0
    %703 = vmatpush1.msra.mxu0 %v687
    %704 = vmatprep.subr.mxu0 0.0
    %705 = vmatpush1.msra.mxu0 %v686
    %706 = vmatprep.subr.mxu0 0.0
    %707 = vmatpush1.msra.mxu0 %v685
    %708 = vmatprep.subr.mxu0 0.0
    %709 = vmatpush1.msra.mxu0 %v684
    %710 = vmatprep.subr.mxu0 0.0
    %711 = vmatpush1.msra.mxu0 %v683
    %712 = vmatprep.subr.mxu0 0.0
    %713 = vmatpush1.msra.mxu0 %v682
    %714 = vmatprep.subr.mxu0 0.0
    %715 = vmatpush1.msra.mxu0 %v681
    %716 = vmatprep.subr.mxu0 0.0
    %717 = vmatpush1.msra.mxu0 %v680
    %718 = vmatprep.subr.mxu0 0.0
    %719 = vmatpush1.msra.mxu0 %v679
    %720 = vmatprep.subr.mxu0 0.0
    %721 = vmatpush1.msra.mxu0 %v678
    %722 = vmatprep.subr.mxu0 0.0
    %723 = vmatpush1.msra.mxu0 %v677
    %724 = vmatprep.subr.mxu0 0.0
    %725 = vmatpush1.msra.mxu0 %v676
    %726 = vmatprep.subr.mxu0 0.0
    %727 = vmatpush1.msra.mxu0 %v675
    %728 = vmatprep.subr.mxu0 0.0
    %729 = vmatpush1.msra.mxu0 %v674
    %730 = vmatprep.subr.mxu0 0.0
    %731 = vmatpush2.msra.mxu0 0.0
    %732 = vmatprep.subr.mxu0 0.0
    %733 = vmatpush2.msra.mxu0 0.0
    %734 = vmatprep.subr.mxu0 0.0
    %735 = vmatpush2.msra.mxu0 0.0
    %736 = vmatprep.subr.mxu0 0.0
    %737 = vmatpush2.msra.mxu0 0.0
    %738 = vmatprep.subr.mxu0 0.0
    %739 = vmatpush2.msra.mxu0 0.0
    %740 = vmatprep.subr.mxu0 0.0
    %741 = vmatpush2.msra.mxu0 0.0
    %742 = vmatprep.subr.mxu0 0.0
    %743 = vmatpush2.msra.mxu0 0.0
    %744 = vmatprep.subr.mxu0 0.0
    %745 = vmatpush2.msra.mxu0 0.0
    %746 = vmatprep.subr.mxu0 0.0
    %747 = vmatpush2.msra.mxu0 0.0
    %748 = vmatprep.subr.mxu0 0.0
    %749 = vmatpush2.msra.mxu0 0.0
    %750 = vmatprep.subr.mxu0 0.0
    %751 = vmatpush2.msra.mxu0 0.0
    %752 = vmatprep.subr.mxu0 0.0
    %753 = vmatpush2.msra.mxu0 0.0
    %754 = vmatprep.subr.mxu0 0.0
    %755 = vmatpush2.msra.mxu0 0.0
    %756 = vmatprep.subr.mxu0 0.0
    %757 = vmatpush2.msra.mxu0 0.0
    %758 = vmatprep.subr.mxu0 0.0
    %759 = vmatpush2.msra.mxu0 0.0
    %760 = vmatprep.subr.mxu0 0.0
    %761 = vmatpush2.msra.mxu0 0.0
    %762 = vmatprep.mubr.f32.mxu0 0.0
    %763 = vmatmul.mubr.f32.gmra.mxu0 %v672
    %v764 = vpop.f32.mrf.mxu0
    %v765 = vadd.f32 %v696, %v764
    %v766 = vpop.f32.mrf.mxu0
    %767 = vdwg.mxu0
    %s768 = scalar_lea.vmem %s2, 16
    %v769 = vld [vmem:[%s768] sm:$0xf]
    %v770 = vld [vmem:[%s768 + $0x4] sm:$0x3]
    %771 = vrot.lane.b32.xlu0 %v55, 124
    %v772 = vpop.permute.xlu0 %771
    %v773 = vsel %vm58, %v772, 0
    %v776 = vsel %vm62, %v770, 0
    %778 = vmatprep.subr.mxu0 0.0
    %779 = vmatpush1.msra.mxu0 0.0
    %780 = vmatprep.subr.mxu0 0.0
    %781 = vmatpush1.msra.mxu0 0.0
    %782 = vmatprep.subr.mxu0 0.0
    %783 = vmatpush1.msra.mxu0 0.0
    %784 = vmatprep.subr.mxu0 0.0
    %785 = vmatpush1.msra.mxu0 0.0
    %786 = vmatprep.subr.mxu0 0.0
    %787 = vmatpush1.msra.mxu0 0.0
    %788 = vmatprep.subr.mxu0 0.0
    %789 = vmatpush1.msra.mxu0 0.0
    %790 = vmatprep.subr.mxu0 0.0
    %791 = vmatpush1.msra.mxu0 0.0
    %792 = vmatprep.subr.mxu0 0.0
    %793 = vmatpush1.msra.mxu0 0.0
    %794 = vmatprep.subr.mxu0 0.0
    %795 = vmatpush1.msra.mxu0 0.0
    %796 = vmatprep.subr.mxu0 0.0
    %797 = vmatpush1.msra.mxu0 0.0
    %798 = vmatprep.subr.mxu0 0.0
    %799 = vmatpush1.msra.mxu0 0.0
    %800 = vmatprep.subr.mxu0 0.0
    %801 = vmatpush1.msra.mxu0 0.0
    %802 = vmatprep.subr.mxu0 0.0
    %803 = vmatpush1.msra.mxu0 0.0
    %804 = vmatprep.subr.mxu0 0.0
    %805 = vmatpush1.msra.mxu0 0.0
    %806 = vmatprep.subr.mxu0 0.0
    %807 = vmatpush1.msra.mxu0 0.0
    %808 = vmatprep.subr.mxu0 0.0
    %809 = vmatpush1.msra.mxu0 %v776
    %810 = vmatprep.subr.mxu0 0.0
    %811 = vmatpush2.msra.mxu0 0.0
    %812 = vmatprep.subr.mxu0 0.0
    %813 = vmatpush2.msra.mxu0 0.0
    %814 = vmatprep.subr.mxu0 0.0
    %815 = vmatpush2.msra.mxu0 0.0
    %816 = vmatprep.subr.mxu0 0.0
    %817 = vmatpush2.msra.mxu0 0.0
    %818 = vmatprep.subr.mxu0 0.0
    %819 = vmatpush2.msra.mxu0 0.0
    %820 = vmatprep.subr.mxu0 0.0
    %821 = vmatpush2.msra.mxu0 0.0
    %822 = vmatprep.subr.mxu0 0.0
    %823 = vmatpush2.msra.mxu0 0.0
    %824 = vmatprep.subr.mxu0 0.0
    %825 = vmatpush2.msra.mxu0 0.0
    %826 = vmatprep.subr.mxu0 0.0
    %827 = vmatpush2.msra.mxu0 0.0
    %828 = vmatprep.subr.mxu0 0.0
    %829 = vmatpush2.msra.mxu0 0.0
    %830 = vmatprep.subr.mxu0 0.0
    %831 = vmatpush2.msra.mxu0 0.0
    %832 = vmatprep.subr.mxu0 0.0
    %833 = vmatpush2.msra.mxu0 0.0
    %834 = vmatprep.subr.mxu0 0.0
    %835 = vmatpush2.msra.mxu0 0.0
    %836 = vmatprep.subr.mxu0 0.0
    %837 = vmatpush2.msra.mxu0 0.0
    %838 = vmatprep.subr.mxu0 0.0
    %839 = vmatpush2.msra.mxu0 0.0
    %840 = vmatprep.subr.mxu0 0.0
    %841 = vmatpush2.msra.mxu0 0.0
    %842 = vmatprep.mubr.f32.mxu0 0.0
    %843 = vmatmul.mubr.f32.gmra.mxu0 %v773
    %v844 = vpop.f32.mrf.mxu0
    %v845 = vadd.f32 0.0, %v844
    %v846 = vpop.f32.mrf.mxu0
    %847 = vdwg.mxu0
    %848 = vrot.lane.b32.xlu0 %v54, 120
    %v849 = vpop.permute.xlu0 %848
    %v850 = vsel %vm136, %v849, 0
    %v853 = vsel %vm140, %v769, 0
    %855 = vmatprep.subr.mxu0 0.0
    %856 = vmatpush1.msra.mxu0 0.0
    %857 = vmatprep.subr.mxu0 0.0
    %858 = vmatpush1.msra.mxu0 0.0
    %859 = vmatprep.subr.mxu0 0.0
    %860 = vmatpush1.msra.mxu0 0.0
    %861 = vmatprep.subr.mxu0 0.0
    %862 = vmatpush1.msra.mxu0 0.0
    %863 = vmatprep.subr.mxu0 0.0
    %864 = vmatpush1.msra.mxu0 0.0
    %865 = vmatprep.subr.mxu0 0.0
    %866 = vmatpush1.msra.mxu0 0.0
    %867 = vmatprep.subr.mxu0 0.0
    %868 = vmatpush1.msra.mxu0 0.0
    %869 = vmatprep.subr.mxu0 0.0
    %870 = vmatpush1.msra.mxu0 0.0
    %871 = vmatprep.subr.mxu0 0.0
    %872 = vmatpush1.msra.mxu0 0.0
    %873 = vmatprep.subr.mxu0 0.0
    %874 = vmatpush1.msra.mxu0 0.0
    %875 = vmatprep.subr.mxu0 0.0
    %876 = vmatpush1.msra.mxu0 0.0
    %877 = vmatprep.subr.mxu0 0.0
    %878 = vmatpush1.msra.mxu0 0.0
    %879 = vmatprep.subr.mxu0 0.0
    %880 = vmatpush1.msra.mxu0 0.0
    %881 = vmatprep.subr.mxu0 0.0
    %882 = vmatpush1.msra.mxu0 0.0
    %883 = vmatprep.subr.mxu0 0.0
    %884 = vmatpush1.msra.mxu0 0.0
    %885 = vmatprep.subr.mxu0 0.0
    %886 = vmatpush1.msra.mxu0 %v853
    %887 = vmatprep.subr.mxu0 0.0
    %888 = vmatpush2.msra.mxu0 0.0
    %889 = vmatprep.subr.mxu0 0.0
    %890 = vmatpush2.msra.mxu0 0.0
    %891 = vmatprep.subr.mxu0 0.0
    %892 = vmatpush2.msra.mxu0 0.0
    %893 = vmatprep.subr.mxu0 0.0
    %894 = vmatpush2.msra.mxu0 0.0
    %895 = vmatprep.subr.mxu0 0.0
    %896 = vmatpush2.msra.mxu0 0.0
    %897 = vmatprep.subr.mxu0 0.0
    %898 = vmatpush2.msra.mxu0 0.0
    %899 = vmatprep.subr.mxu0 0.0
    %900 = vmatpush2.msra.mxu0 0.0
    %901 = vmatprep.subr.mxu0 0.0
    %902 = vmatpush2.msra.mxu0 0.0
    %903 = vmatprep.subr.mxu0 0.0
    %904 = vmatpush2.msra.mxu0 0.0
    %905 = vmatprep.subr.mxu0 0.0
    %906 = vmatpush2.msra.mxu0 0.0
    %907 = vmatprep.subr.mxu0 0.0
    %908 = vmatpush2.msra.mxu0 0.0
    %909 = vmatprep.subr.mxu0 0.0
    %910 = vmatpush2.msra.mxu0 0.0
    %911 = vmatprep.subr.mxu0 0.0
    %912 = vmatpush2.msra.mxu0 0.0
    %913 = vmatprep.subr.mxu0 0.0
    %914 = vmatpush2.msra.mxu0 0.0
    %915 = vmatprep.subr.mxu0 0.0
    %916 = vmatpush2.msra.mxu0 0.0
    %917 = vmatprep.subr.mxu0 0.0
    %918 = vmatpush2.msra.mxu0 0.0
    %919 = vmatprep.mubr.f32.mxu0 0.0
    %920 = vmatmul.mubr.f32.gmra.mxu0 %v850
    %v921 = vpop.f32.mrf.mxu0
    %v922 = vadd.f32 %v845, %v921
    %v923 = vpop.f32.mrf.mxu0
    %924 = vdwg.mxu0
    %s925 = scalar_lea.vmem %s3, 2
    %v926 = vld [vmem:[%s925] sm:$0x1]
    %v928 = vlaneseq
    %v929 = vshrl.u32 %v928, 7
    %v930 = vsub.s32 0, %v929
    %v931 = vrot.slane %v926, %v930
    %v933 = vadd.f32 %v922, %v931
    %v934 = vmax.f32 %v933, 0.0
    %s935 = scalar_lea.vmem %s4, 256
    %v936 = vld [vmem:[%s935] sm:$0xff]
    %v937 = vld [vmem:[%s935 + $0x8] sm:$0xff]
    %v938 = vld [vmem:[%s935 + $0x10] sm:$0xff]
    %v939 = vld [vmem:[%s935 + $0x18] sm:$0xff]
    %v940 = vld [vmem:[%s935 + $0x20] sm:$0xff]
    %v941 = vld [vmem:[%s935 + $0x28] sm:$0xff]
    %v942 = vld [vmem:[%s935 + $0x30] sm:$0xff]
    %v943 = vld [vmem:[%s935 + $0x38] sm:$0xff]
    %v944 = vld [vmem:[%s935 + $0x40] sm:$0xff]
    %v945 = vld [vmem:[%s935 + $0x48] sm:$0xff]
    %v946 = vld [vmem:[%s935 + $0x50] sm:$0xff]
    %v947 = vld [vmem:[%s935 + $0x58] sm:$0xff]
    %v948 = vld [vmem:[%s935 + $0x60] sm:$0xff]
    %v949 = vld [vmem:[%s935 + $0x68] sm:$0xff]
    %v950 = vld [vmem:[%s935 + $0x70] sm:$0xff]
    %v951 = vld [vmem:[%s935 + $0x78] sm:$0xff]
    %s952 = scalar_lea.vmem %s5, 2
    %v953 = vld [vmem:[%s952] sm:$0x1]
    %v955 = vlaneseq
    %v956 = vshrl.u32 %v955, 7
    %v957 = vsub.s32 0, %v956
    %v958 = vrot.slane %v953, %v957
    %960 = vmatprep.subr.mxu0 0.0
    %961 = vmatpush1.msra.mxu0 %v951
    %962 = vmatprep.subr.mxu0 0.0
    %963 = vmatpush1.msra.mxu0 %v950
    %964 = vmatprep.subr.mxu0 0.0
    %965 = vmatpush1.msra.mxu0 %v949
    %966 = vmatprep.subr.mxu0 0.0
    %967 = vmatpush1.msra.mxu0 %v948
    %968 = vmatprep.subr.mxu0 0.0
    %969 = vmatpush1.msra.mxu0 %v947
    %970 = vmatprep.subr.mxu0 0.0
    %971 = vmatpush1.msra.mxu0 %v946
    %972 = vmatprep.subr.mxu0 0.0
    %973 = vmatpush1.msra.mxu0 %v945
    %974 = vmatprep.subr.mxu0 0.0
    %975 = vmatpush1.msra.mxu0 %v944
    %976 = vmatprep.subr.mxu0 0.0
    %977 = vmatpush1.msra.mxu0 %v943
    %978 = vmatprep.subr.mxu0 0.0
    %979 = vmatpush1.msra.mxu0 %v942
    %980 = vmatprep.subr.mxu0 0.0
    %981 = vmatpush1.msra.mxu0 %v941
    %982 = vmatprep.subr.mxu0 0.0
    %983 = vmatpush1.msra.mxu0 %v940
    %984 = vmatprep.subr.mxu0 0.0
    %985 = vmatpush1.msra.mxu0 %v939
    %986 = vmatprep.subr.mxu0 0.0
    %987 = vmatpush1.msra.mxu0 %v938
    %988 = vmatprep.subr.mxu0 0.0
    %989 = vmatpush1.msra.mxu0 %v937
    %990 = vmatprep.subr.mxu0 0.0
    %991 = vmatpush1.msra.mxu0 %v936
    %992 = vmatprep.subr.mxu0 0.0
    %993 = vmatpush2.msra.mxu0 0.0
    %994 = vmatprep.subr.mxu0 0.0
    %995 = vmatpush2.msra.mxu0 0.0
    %996 = vmatprep.subr.mxu0 0.0
    %997 = vmatpush2.msra.mxu0 0.0
    %998 = vmatprep.subr.mxu0 0.0
    %999 = vmatpush2.msra.mxu0 0.0
    %1000 = vmatprep.subr.mxu0 0.0
    %1001 = vmatpush2.msra.mxu0 0.0
    %1002 = vmatprep.subr.mxu0 0.0
    %1003 = vmatpush2.msra.mxu0 0.0
    %1004 = vmatprep.subr.mxu0 0.0
    %1005 = vmatpush2.msra.mxu0 0.0
    %1006 = vmatprep.subr.mxu0 0.0
    %1007 = vmatpush2.msra.mxu0 0.0
    %1008 = vmatprep.subr.mxu0 0.0
    %1009 = vmatpush2.msra.mxu0 0.0
    %1010 = vmatprep.subr.mxu0 0.0
    %1011 = vmatpush2.msra.mxu0 0.0
    %1012 = vmatprep.subr.mxu0 0.0
    %1013 = vmatpush2.msra.mxu0 0.0
    %1014 = vmatprep.subr.mxu0 0.0
    %1015 = vmatpush2.msra.mxu0 0.0
    %1016 = vmatprep.subr.mxu0 0.0
    %1017 = vmatpush2.msra.mxu0 0.0
    %1018 = vmatprep.subr.mxu0 0.0
    %1019 = vmatpush2.msra.mxu0 0.0
    %1020 = vmatprep.subr.mxu0 0.0
    %1021 = vmatpush2.msra.mxu0 0.0
    %1022 = vmatprep.subr.mxu0 0.0
    %1023 = vmatpush2.msra.mxu0 0.0
    %1024 = vmatprep.mubr.f32.mxu0 0.0
    %1025 = vmatmul.mubr.f32.gmra.mxu0 %v934
    %v1026 = vpop.f32.mrf.mxu0
    %v1027 = vadd.f32 %v958, %v1026
    %v1028 = vpop.f32.mrf.mxu0
    %1029 = vdwg.mxu0
    %v1030 = vmax.f32 %v1027, 0.0
    %s1031 = scalar_lea.vmem %s6, 256
    %v1032 = vld [vmem:[%s1031] sm:$0xff]
    %v1033 = vld [vmem:[%s1031 + $0x8] sm:$0xff]
    %v1034 = vld [vmem:[%s1031 + $0x10] sm:$0xff]
    %v1035 = vld [vmem:[%s1031 + $0x18] sm:$0xff]
    %v1036 = vld [vmem:[%s1031 + $0x20] sm:$0xff]
    %v1037 = vld [vmem:[%s1031 + $0x28] sm:$0xff]
    %v1038 = vld [vmem:[%s1031 + $0x30] sm:$0xff]
    %v1039 = vld [vmem:[%s1031 + $0x38] sm:$0xff]
    %v1040 = vld [vmem:[%s1031 + $0x40] sm:$0xff]
    %v1041 = vld [vmem:[%s1031 + $0x48] sm:$0xff]
    %v1042 = vld [vmem:[%s1031 + $0x50] sm:$0xff]
    %v1043 = vld [vmem:[%s1031 + $0x58] sm:$0xff]
    %v1044 = vld [vmem:[%s1031 + $0x60] sm:$0xff]
    %v1045 = vld [vmem:[%s1031 + $0x68] sm:$0xff]
    %v1046 = vld [vmem:[%s1031 + $0x70] sm:$0xff]
    %v1047 = vld [vmem:[%s1031 + $0x78] sm:$0xff]
    %s1048 = scalar_lea.vmem %s7, 2
    %v1049 = vld [vmem:[%s1048] sm:$0x1]
    %v1051 = vlaneseq
    %v1052 = vshrl.u32 %v1051, 7
    %v1053 = vsub.s32 0, %v1052
    %v1054 = vrot.slane %v1049, %v1053
    %1056 = vmatprep.subr.mxu0 0.0
    %1057 = vmatpush1.msra.mxu0 %v1047
    %1058 = vmatprep.subr.mxu0 0.0
    %1059 = vmatpush1.msra.mxu0 %v1046
    %1060 = vmatprep.subr.mxu0 0.0
    %1061 = vmatpush1.msra.mxu0 %v1045
    %1062 = vmatprep.subr.mxu0 0.0
    %1063 = vmatpush1.msra.mxu0 %v1044
    %1064 = vmatprep.subr.mxu0 0.0
    %1065 = vmatpush1.msra.mxu0 %v1043
    %1066 = vmatprep.subr.mxu0 0.0
    %1067 = vmatpush1.msra.mxu0 %v1042
    %1068 = vmatprep.subr.mxu0 0.0
    %1069 = vmatpush1.msra.mxu0 %v1041
    %1070 = vmatprep.subr.mxu0 0.0
    %1071 = vmatpush1.msra.mxu0 %v1040
    %1072 = vmatprep.subr.mxu0 0.0
    %1073 = vmatpush1.msra.mxu0 %v1039
    %1074 = vmatprep.subr.mxu0 0.0
    %1075 = vmatpush1.msra.mxu0 %v1038
    %1076 = vmatprep.subr.mxu0 0.0
    %1077 = vmatpush1.msra.mxu0 %v1037
    %1078 = vmatprep.subr.mxu0 0.0
    %1079 = vmatpush1.msra.mxu0 %v1036
    %1080 = vmatprep.subr.mxu0 0.0
    %1081 = vmatpush1.msra.mxu0 %v1035
    %1082 = vmatprep.subr.mxu0 0.0
    %1083 = vmatpush1.msra.mxu0 %v1034
    %1084 = vmatprep.subr.mxu0 0.0
    %1085 = vmatpush1.msra.mxu0 %v1033
    %1086 = vmatprep.subr.mxu0 0.0
    %1087 = vmatpush1.msra.mxu0 %v1032
    %1088 = vmatprep.subr.mxu0 0.0
    %1089 = vmatpush2.msra.mxu0 0.0
    %1090 = vmatprep.subr.mxu0 0.0
    %1091 = vmatpush2.msra.mxu0 0.0
    %1092 = vmatprep.subr.mxu0 0.0
    %1093 = vmatpush2.msra.mxu0 0.0
    %1094 = vmatprep.subr.mxu0 0.0
    %1095 = vmatpush2.msra.mxu0 0.0
    %1096 = vmatprep.subr.mxu0 0.0
    %1097 = vmatpush2.msra.mxu0 0.0
    %1098 = vmatprep.subr.mxu0 0.0
    %1099 = vmatpush2.msra.mxu0 0.0
    %1100 = vmatprep.subr.mxu0 0.0
    %1101 = vmatpush2.msra.mxu0 0.0
    %1102 = vmatprep.subr.mxu0 0.0
    %1103 = vmatpush2.msra.mxu0 0.0
    %1104 = vmatprep.subr.mxu0 0.0
    %1105 = vmatpush2.msra.mxu0 0.0
    %1106 = vmatprep.subr.mxu0 0.0
    %1107 = vmatpush2.msra.mxu0 0.0
    %1108 = vmatprep.subr.mxu0 0.0
    %1109 = vmatpush2.msra.mxu0 0.0
    %1110 = vmatprep.subr.mxu0 0.0
    %1111 = vmatpush2.msra.mxu0 0.0
    %1112 = vmatprep.subr.mxu0 0.0
    %1113 = vmatpush2.msra.mxu0 0.0
    %1114 = vmatprep.subr.mxu0 0.0
    %1115 = vmatpush2.msra.mxu0 0.0
    %1116 = vmatprep.subr.mxu0 0.0
    %1117 = vmatpush2.msra.mxu0 0.0
    %1118 = vmatprep.subr.mxu0 0.0
    %1119 = vmatpush2.msra.mxu0 0.0
    %1120 = vmatprep.mubr.f32.mxu0 0.0
    %1121 = vmatmul.mubr.f32.gmra.mxu0 %v1030
    %v1122 = vpop.f32.mrf.mxu0
    %v1123 = vadd.f32 %v1054, %v1122
    %v1124 = vpop.f32.mrf.mxu0
    %1125 = vdwg.mxu0
    %1127 = vrot.lane.b32.xlu0 %v765, 8
    %v1128 = vpop.permute.xlu0 %1127
    %1131 = vrot.lane.b32.xlu0 %v1123, 16
    %v1132 = vpop.permute.xlu0 %1131
    %vm1134 = vcmask 64512
    %v1135 = vsel %vm1134, %v407, %v1128
    %vm1136 = vcmask 130048
    %v1137 = vsel %vm1136, %v1135, %v1132
    %vm1138 = vcmask 195584
    %1139 = vst.msk [vmem:[#allocation7] sm:$0xff] %vm1138, %v1137
    // Predicated region
    $region42: #{tpu_custom_call.1} parent=1 // pred_check
      _
    $region43: #{tpu_custom_call.1} parent=1 // pred_check_branch
      %1141 = sbr.rel (0) target = $region45
    $region44: #{tpu_custom_call.1} parent=1 // pred_region
      %s1143 = ssub.s32 128, 128
      %1144 = vsyncadd [#allocation4], %s1143
      %s1146 = sshll.u32 [#allocation7], 4
      %s1147 = int_to_ptr.vmem [resolvable:$true] %s1146
      %1149 = dma.vmem_to_hbm [thread:$0]  %s1147, 128, %s8, [#allocation4]
    $region45: #{tpu_custom_call.1} parent=1 // pred_fallthru
      _
    // Predicated region
    $region46: #{tpu_custom_call.1} parent=1 // pred_check
      _
    $region47: #{tpu_custom_call.1} parent=1 // pred_check_branch
      %1151 = sbr.rel (0) target = $region49
    $region48: #{tpu_custom_call.1} parent=1 // pred_region
      %1152 = dma.done [#allocation4], 128
    $region49: #{tpu_custom_call.1} parent=1 // pred_fallthru
      _
    %1153 = vsyncpa [#allocation3], 1
    %1154 = vsyncpa [#allocation6], 1
    %1155 = vsyncpa [#allocation4], 1

</llo_original>
